<compile_context>
chip_gen: v7x
topology: tpu7x:2x2x1
jax: 0.10.0
libtpu: 0.0.40
codegen_flags: <defaults>
</compile_context>

<pallas_src>
import jax
import jax.numpy as jnp
from jax.experimental import pallas as pl
from jax.experimental.pallas import tpu as pltpu

_LANE = 128
_MAX_TILE_HW = 8 * 1024                   # lane-axis tile cap (elements)
_TARGET_BLOCK_BYTES = 4 * 1024 * 1024     # ~4 MiB per x block
_VMEM_LIMIT_BYTES = 48 * 1024 * 1024      # headroom under v7x's 64 MiB/TC


def _frozen_bn_kernel(x_ref, scale_ref, bias_ref, o_ref):
    # x_ref/o_ref: (TILE_R, TILE_HW); scale_ref/bias_ref: (TILE_R, 1) float32.
    # Fused mul-add in f32, single cast at the store.  Kernel is HBM-bound;
    # the upcast/downcast rides in VPU slack.
    x = x_ref[...].astype(jnp.float32)
    o_ref[...] = (x * scale_ref[...] + bias_ref[...]).astype(o_ref.dtype)


def _round_up(a, m):
    return ((a + m - 1) // m) * m


def frozen_batch_norm(x, weight, bias, running_mean, running_var):
    """y = x * scale + bias with scale = weight * rsqrt(running_var),
    bias = bias - running_mean * scale (frozen stats, no eps, no update).
    x: (N, C, *spatial); affine is applied along dim 1."""
    orig_shape = x.shape
    N, C = orig_shape[0], orig_shape[1]
    HW = 1
    for d in orig_shape[2:]:
        HW *= d
    dt = x.dtype
    itemsize = jnp.dtype(dt).itemsize

    # Fold the per-channel affine in float32 (O(C), done by XLA).
    scale_f32 = weight.astype(jnp.float32) * jax.lax.rsqrt(
        running_var.astype(jnp.float32))
    bias_f32 = (bias.astype(jnp.float32)
                - running_mean.astype(jnp.float32) * scale_f32)

    # Flatten to (N*C, HW).  Row r = n*C + c, so params are tiled N times.
    # TODO(synk): if xprof shows a relayout copy feeding the pallas_call
    # (non-lane-friendly W), arrange for upstream/downstream ops to produce /
    # consume the (N*C, HW) layout so the reshape fuses.
    R = N * C
    x2 = x.reshape(R, HW)
    scale_p = jnp.tile(scale_f32, (N,)).reshape(R, 1)
    bias_p = jnp.tile(bias_f32, (N,)).reshape(R, 1)

    # Tile sizing: lane-dense HW tiles (multiple of 128, capped), row tiles in
    # multiples of the sublane count; full extents are used when smaller.
    sublane = max(1, 32 // itemsize)          # 8 f32, 16 bf16, 32 int8
    tile_hw = min(_MAX_TILE_HW, _round_up(HW, _LANE))
    tile_r = _TARGET_BLOCK_BYTES // max(1, tile_hw * itemsize)
    tile_r = max(sublane, (tile_r // sublane) * sublane)
    if tile_r >= R:
        tile_r = R                            # full row extent is always legal

    grid = (pl.cdiv(R, tile_r), pl.cdiv(HW, tile_hw))

    x_spec = pl.BlockSpec((tile_r, tile_hw), lambda r, h: (r, h))
    param_spec = pl.BlockSpec((tile_r, 1), lambda r, h: (r, 0))
    out_spec = pl.BlockSpec((tile_r, tile_hw), lambda r, h: (r, h))

    cost = pl.CostEstimate(
        flops=2 * R * HW,
        transcendentals=0,
        bytes_accessed=2 * R * HW * itemsize + 2 * R * 4,
    )

    out = pl.pallas_call(
        _frozen_bn_kernel,
        out_shape=jax.ShapeDtypeStruct((R, HW), dt),
        grid_spec=pltpu.PrefetchScalarGridSpec(
            num_scalar_prefetch=0,
            grid=grid,
            in_specs=[x_spec, param_spec, param_spec],
            out_specs=out_spec,
        ),
        compiler_params=pltpu.CompilerParams(
            dimension_semantics=("parallel", "parallel"),
            vmem_limit_bytes=_VMEM_LIMIT_BYTES,
        ),
        cost_estimate=cost,
    )(x2, scale_p, bias_p)

    return out.reshape(orig_shape)


if __name__ == "__main__":
    key = jax.random.PRNGKey(0)

    def ref_fn(x, w, b, rm, rv):
        # Pure-JAX reference mirroring the PyTorch forward (no eps), computed
        # in f32 and cast back to x.dtype.
        scale = w.astype(jnp.float32) * jax.lax.rsqrt(rv.astype(jnp.float32))
        bias = b.astype(jnp.float32) - rm.astype(jnp.float32) * scale
        bshape = (1, x.shape[1]) + (1,) * (x.ndim - 2)
        y = (x.astype(jnp.float32) * scale.reshape(bshape)
             + bias.reshape(bshape))
        return y.astype(x.dtype)

    cases = [
        # (shape, dtype, tolerance)
        ((2, 4, 8, 16, 16), jnp.float32, 1e-5),    # small C (< sublane), lane-aligned HW
        ((2, 16, 3, 10, 13), jnp.float32, 1e-5),   # C multiple of 8, HW % 128 != 0 (masked lanes)
        ((2, 8, 4, 8, 20), jnp.bfloat16, 2e-2),    # half-precision input path
    ]

    for shape, dtype, tol in cases:
        key, kx, kw, kb, km, kv = jax.random.split(key, 6)
        C = shape[1]
        x = jax.random.normal(kx, shape, dtype=jnp.float32).astype(dtype)
        weight = jax.random.normal(kw, (C,), dtype=jnp.float32) * 0.5 + 1.0
        bias = jax.random.normal(kb, (C,), dtype=jnp.float32) * 0.1
        running_mean = jax.random.normal(km, (C,), dtype=jnp.float32) * 0.2
        running_var = jax.random.uniform(kv, (C,), dtype=jnp.float32,
                                         minval=0.5, maxval=1.5)

        y = frozen_batch_norm(x, weight, bias, running_mean, running_var)
        y = jax.block_until_ready(y)
        y_ref = ref_fn(x, weight, bias, running_mean, running_var)

        assert y.shape == x.shape and y.dtype == x.dtype, (y.shape, y.dtype)
        assert jnp.allclose(y.astype(jnp.float32), y_ref.astype(jnp.float32),
                            atol=tol, rtol=tol), f"mismatch for {shape} {dtype}"

    print("KERNEL_OK")
</pallas_src>

<mosaic_0001>
module attributes {stable_mosaic.version = 11 : i64} {
  func.func @_frozen_bn_kernel(%arg0: i32, %arg1: i32, %arg2: memref<8x2048xf32, #tpu.memory_space<vmem>>, %arg3: memref<8x1xf32, #tpu.memory_space<vmem>>, %arg4: memref<8x1xf32, #tpu.memory_space<vmem>>, %arg5: memref<8x2048xf32, #tpu.memory_space<vmem>>) attributes {dimension_semantics = [#tpu.dimension_semantics<parallel>, #tpu.dimension_semantics<parallel>], iteration_bounds = array<i64: 1, 1>, scalar_prefetch = 0 : i64, scratch_operands = 0 : i64, tpu.core_type = #tpu.core_type<tc>, window_params = [{transform_indices = @transform_0, window_bounds = array<i64: 8, 2048>}, {transform_indices = @transform_1, window_bounds = array<i64: 8, 1>}, {transform_indices = @transform_2, window_bounds = array<i64: 8, 1>}, {transform_indices = @transform_3, window_bounds = array<i64: 8, 2048>}]} {
    %c0 = arith.constant 0 : index
    %c0_0 = arith.constant 0 : index
    %0 = vector.load %arg2[%c0, %c0_0] : memref<8x2048xf32, #tpu.memory_space<vmem>>, vector<8x2048xf32>
    %c0_1 = arith.constant 0 : index
    %c0_2 = arith.constant 0 : index
    %1 = vector.load %arg3[%c0_1, %c0_2] : memref<8x1xf32, #tpu.memory_space<vmem>>, vector<8x1xf32>
    %2 = vector.broadcast %1 : vector<8x1xf32> to vector<8x2048xf32>
    %3 = arith.mulf %0, %2 : vector<8x2048xf32>
    %c0_3 = arith.constant 0 : index
    %c0_4 = arith.constant 0 : index
    %4 = vector.load %arg4[%c0_3, %c0_4] : memref<8x1xf32, #tpu.memory_space<vmem>>, vector<8x1xf32>
    %5 = vector.broadcast %4 : vector<8x1xf32> to vector<8x2048xf32>
    %6 = arith.addf %3, %5 : vector<8x2048xf32>
    %c0_5 = arith.constant 0 : index
    %c0_6 = arith.constant 0 : index
    %7 = vector.load %arg5[%c0_5, %c0_6] : memref<8x2048xf32, #tpu.memory_space<vmem>>, vector<8x2048xf32>
    tpu.vector_store %arg5[%c0_5, %c0_6], %6 {strides = array<i32>} : memref<8x2048xf32, #tpu.memory_space<vmem>>, vector<8x2048xf32>,
    return
  }
  func.func @transform_0(%arg0: i32, %arg1: i32) -> (i32, i32) {
    %c0_i32 = arith.constant 0 : i32
    return %arg0, %arg1 : i32, i32
  }
  func.func @transform_1(%arg0: i32, %arg1: i32) -> (i32, i32) {
    %c0_i32 = arith.constant 0 : i32
    %c0_i32_0 = arith.constant 0 : i32
    return %arg0, %c0_i32 : i32, i32
  }
  func.func @transform_2(%arg0: i32, %arg1: i32) -> (i32, i32) {
    %c0_i32 = arith.constant 0 : i32
    %c0_i32_0 = arith.constant 0 : i32
    return %arg0, %c0_i32 : i32, i32
  }
  func.func @transform_3(%arg0: i32, %arg1: i32) -> (i32, i32) {
    %c0_i32 = arith.constant 0 : i32
    return %arg0, %arg1 : i32, i32
  }
}

</mosaic_0001>

<llo_original>
// kernel: tpu_custom_call.1
$region0: #{tpu_custom_call.1}
  #allocation0 [shape = 'u32[]', space=smem, size = 0x4, offset = 0x4, fixed_abs, tag = 'smem constant byte address 0x4 - core index']
  #allocation1 [shape = 'u32[144,128]{1,0:T(1,128)}', space=vmem, size = 0x12000, scoped, tag = 'internal scratch']
  %s0 = inlined_call_operand.hbm [shape: f32[8,2048], index: 0, kind: input, shape index: {}]
  %s1 = inlined_call_operand.vmem [shape: f32[8,1], index: 1, kind: input, shape index: {}]
  %s2 = inlined_call_operand.vmem [shape: f32[8,1], index: 2, kind: input, shape index: {}]
  %s3 = inlined_call_operand.hbm [shape: f32[8,2048], index: 3, kind: output, shape index: {}]
  %s4 = sld [smem:[#allocation0]]
  $region26: #{tpu_custom_call.1} parent=0
    _
  %s6 = ssub.s32 1, %s4
  %s7 = scalar_select 0, %s6, %s4
  $region1: #{tpu_custom_call.1} parent=0
    #allocation2 [shape = 'u8[65536]{0}', space=vmem, size = 0x10000, scoped, tag = 'input window, operand 0, single buffered']
    #allocation3 [shape = 's32[1]{0}', space=sflag, size = 0x4, scoped, tag = 'scoped memory for tpu_custom_call.1']
    #allocation4 [shape = 's32[1]{0}', space=sflag, size = 0x4, scoped, tag = 'scoped memory for tpu_custom_call.1']
    #allocation5 [shape = 'u8[65536]{0}', space=vmem, size = 0x10000, scoped, tag = 'output window, operand 0, single buffered']
    %8 = vsyncpa [#allocation3], 0
    %9 = vsyncpa [#allocation4], 0
    // Predicated region
    $region2: #{tpu_custom_call.1} parent=1 // pred_check
      _
    $region3: #{tpu_custom_call.1} parent=1 // pred_check_branch
      %11 = sbr.rel (0) target = $region5
    $region4: #{tpu_custom_call.1} parent=1 // pred_region
      %s13 = ssub.s32 2048, 2048
      %14 = vsyncadd [#allocation3], %s13
      %s16 = sshll.u32 [#allocation2], 4
      %s17 = int_to_ptr.vmem [resolvable:$true] %s16
      %19 = dma.hbm_to_vmem [thread:$0]  %s0, 2048, %s17, [#allocation3]
    $region5: #{tpu_custom_call.1} parent=1 // pred_fallthru
      _
    // Predicated region
    $region6: #{tpu_custom_call.1} parent=1 // pred_check
      _
    $region7: #{tpu_custom_call.1} parent=1 // pred_check_branch
      %21 = sbr.rel (0) target = $region9
    $region8: #{tpu_custom_call.1} parent=1 // pred_region
      _
    $region9: #{tpu_custom_call.1} parent=1 // pred_fallthru
      _
    // Predicated region
    $region10: #{tpu_custom_call.1} parent=1 // pred_check
      _
    $region11: #{tpu_custom_call.1} parent=1 // pred_check_branch
      %23 = sbr.rel (0) target = $region13
    $region12: #{tpu_custom_call.1} parent=1 // pred_region
      _
    $region13: #{tpu_custom_call.1} parent=1 // pred_fallthru
      _
    // Predicated region
    $region14: #{tpu_custom_call.1} parent=1 // pred_check
      _
    $region15: #{tpu_custom_call.1} parent=1 // pred_check_branch
      %25 = sbr.rel (0) target = $region17
    $region16: #{tpu_custom_call.1} parent=1 // pred_region
      %26 = dma.done [#allocation3], 2048
    $region17: #{tpu_custom_call.1} parent=1 // pred_fallthru
      _
    %v27 = vld [vmem:[#allocation2] sm:$0xff]
    %v28 = vld [vmem:[#allocation2 + $0x8] sm:$0xff]
    %v29 = vld [vmem:[#allocation2 + $0x10] sm:$0xff]
    %v30 = vld [vmem:[#allocation2 + $0x18] sm:$0xff]
    %v31 = vld [vmem:[#allocation2 + $0x20] sm:$0xff]
    %v32 = vld [vmem:[#allocation2 + $0x28] sm:$0xff]
    %v33 = vld [vmem:[#allocation2 + $0x30] sm:$0xff]
    %v34 = vld [vmem:[#allocation2 + $0x38] sm:$0xff]
    %v35 = vld [vmem:[#allocation2 + $0x40] sm:$0xff]
    %v36 = vld [vmem:[#allocation2 + $0x48] sm:$0xff]
    %v37 = vld [vmem:[#allocation2 + $0x50] sm:$0xff]
    %v38 = vld [vmem:[#allocation2 + $0x58] sm:$0xff]
    %v39 = vld [vmem:[#allocation2 + $0x60] sm:$0xff]
    %v40 = vld [vmem:[#allocation2 + $0x68] sm:$0xff]
    %v41 = vld [vmem:[#allocation2 + $0x70] sm:$0xff]
    %v42 = vld [vmem:[#allocation2 + $0x78] sm:$0xff]
    %v43 = vld [vmem:[%s1] sm:$0xff]
    %45 = vset.pattern.permute.xlu0 0
    %46 = vperm.xlu0 %45, %v43
    %v47 = vpop.permute.xlu0 %46
    %v49 = vmul.f32 %v27, %v47
    %v50 = vmul.f32 %v28, %v47
    %v51 = vmul.f32 %v29, %v47
    %v52 = vmul.f32 %v30, %v47
    %v53 = vmul.f32 %v31, %v47
    %v54 = vmul.f32 %v32, %v47
    %v55 = vmul.f32 %v33, %v47
    %v56 = vmul.f32 %v34, %v47
    %v57 = vmul.f32 %v35, %v47
    %v58 = vmul.f32 %v36, %v47
    %v59 = vmul.f32 %v37, %v47
    %v60 = vmul.f32 %v38, %v47
    %v61 = vmul.f32 %v39, %v47
    %v62 = vmul.f32 %v40, %v47
    %v63 = vmul.f32 %v41, %v47
    %v64 = vmul.f32 %v42, %v47
    %v65 = vld [vmem:[%s2] sm:$0xff]
    %67 = vset.pattern.permute.xlu0 0
    %68 = vperm.xlu0 %67, %v65
    %v69 = vpop.permute.xlu0 %68
    %v71 = vadd.f32 %v49, %v69
    %v72 = vadd.f32 %v50, %v69
    %v73 = vadd.f32 %v51, %v69
    %v74 = vadd.f32 %v52, %v69
    %v75 = vadd.f32 %v53, %v69
    %v76 = vadd.f32 %v54, %v69
    %v77 = vadd.f32 %v55, %v69
    %v78 = vadd.f32 %v56, %v69
    %v79 = vadd.f32 %v57, %v69
    %v80 = vadd.f32 %v58, %v69
    %v81 = vadd.f32 %v59, %v69
    %v82 = vadd.f32 %v60, %v69
    %v83 = vadd.f32 %v61, %v69
    %v84 = vadd.f32 %v62, %v69
    %v85 = vadd.f32 %v63, %v69
    %v86 = vadd.f32 %v64, %v69
    %87 = vst [vmem:[#allocation5] sm:$0xff] %v71
    %88 = vst [vmem:[#allocation5 + $0x8] sm:$0xff] %v72
    %89 = vst [vmem:[#allocation5 + $0x10] sm:$0xff] %v73
    %90 = vst [vmem:[#allocation5 + $0x18] sm:$0xff] %v74
    %91 = vst [vmem:[#allocation5 + $0x20] sm:$0xff] %v75
    %92 = vst [vmem:[#allocation5 + $0x28] sm:$0xff] %v76
    %93 = vst [vmem:[#allocation5 + $0x30] sm:$0xff] %v77
    %94 = vst [vmem:[#allocation5 + $0x38] sm:$0xff] %v78
    %95 = vst [vmem:[#allocation5 + $0x40] sm:$0xff] %v79
    %96 = vst [vmem:[#allocation5 + $0x48] sm:$0xff] %v80
    %97 = vst [vmem:[#allocation5 + $0x50] sm:$0xff] %v81
    %98 = vst [vmem:[#allocation5 + $0x58] sm:$0xff] %v82
    %99 = vst [vmem:[#allocation5 + $0x60] sm:$0xff] %v83
    %100 = vst [vmem:[#allocation5 + $0x68] sm:$0xff] %v84
    %101 = vst [vmem:[#allocation5 + $0x70] sm:$0xff] %v85
    %102 = vst [vmem:[#allocation5 + $0x78] sm:$0xff] %v86
    // Predicated region
    $region18: #{tpu_custom_call.1} parent=1 // pred_check
      _
    $region19: #{tpu_custom_call.1} parent=1 // pred_check_branch
      %104 = sbr.rel (0) target = $region21
    $region20: #{tpu_custom_call.1} parent=1 // pred_region
      %s106 = ssub.s32 2048, 2048
      %107 = vsyncadd [#allocation4], %s106
      %s109 = sshll.u32 [#allocation5], 4
      %s110 = int_to_ptr.vmem [resolvable:$true] %s109
      %112 = dma.vmem_to_hbm [thread:$0]  %s110, 2048, %s3, [#allocation4]
    $region21: #{tpu_custom_call.1} parent=1 // pred_fallthru
      _
    // Predicated region
    $region22: #{tpu_custom_call.1} parent=1 // pred_check
      _
    $region23: #{tpu_custom_call.1} parent=1 // pred_check_branch
      %114 = sbr.rel (0) target = $region25
    $region24: #{tpu_custom_call.1} parent=1 // pred_region
      %115 = dma.done [#allocation4], 2048
    $region25: #{tpu_custom_call.1} parent=1 // pred_fallthru
      _
    %116 = vsyncpa [#allocation3], 1
    %117 = vsyncpa [#allocation4], 1

</llo_original>
